<compile_context>
chip_gen: v6e
topology: v6e:2x2x1
jax: 0.10.0
libtpu: 0.0.40
codegen_flags: <defaults>
</compile_context>

<pallas_src>
import jax
import jax.numpy as jnp
from jax.experimental import pallas as pl
from jax.experimental.pallas import tpu as pltpu

BN_EPS = 1e-5
LANE = 128       # lane width: hidden dims padded to this (weights are tiny)
PACK = 16        # bf16 sublane packing: input feature dim padded only to this


def _leaky(x, slope):
    return jnp.where(x >= 0, x, slope * x)


def _round_up(n, m):
    return ((n + m - 1) // m) * m


def _pad2(a, rows, cols):
    r, c = a.shape
    if r == rows and c == cols:
        return a
    return jnp.pad(a, ((0, rows - r), (0, cols - c)))


def _pick_batch_tile(B):
    """Multiple of 8 that divides B, <= 1024, giving grid >= 2 when possible."""
    if B <= 8:
        return B
    t = max(8, (min(1024, B // 2) // 8) * 8)
    while t > 8 and B % t != 0:
        t -= 8
    return t if B % t == 0 else B


def _vmem_limit_bytes(tb, dp, h0p, h1p, compute_dtype):
    wb = jnp.dtype(compute_dtype).itemsize
    weights = 2 * ((dp * h0p + h0p * h1p) * wb + (h0p + 2 * h1p + 1) * 4)
    io = 2 * tb * dp * wb + 2 * tb * 4      # double-buffered x / out tiles
    inter = 2 * tb * max(h0p, h1p) * 4      # fused f32 intermediates + headroom
    need = weights + io + inter
    return int(min(max(2 * need, 8 << 20), 48 << 20))


def mlp_reg_kernel(x_ref, w0_ref, b0_ref, w1_ref, b1_ref, wo_ref, bo_ref, out_ref):
    # ---- layer 0: (BN-folded) Linear + LeakyReLU(0.2); Dropout = identity in eval
    h = jnp.dot(x_ref[...], w0_ref[...],
                preferred_element_type=jnp.float32) + b0_ref[...]
    h = _leaky(h, 0.2)
    # TODO(synk): Dropout(0.5) is identity in eval mode; training-mode masking not emitted.

    # ---- layer 1: (BN-folded) Linear + LeakyReLU(0.2); Dropout = identity in eval
    h = jnp.dot(h.astype(w1_ref.dtype), w1_ref[...],
                preferred_element_type=jnp.float32) + b1_ref[...]
    h = _leaky(h, 0.2)

    # ---- output head (width 1): VPU multiply + XLU lane reduce (keeps the MXU free),
    #      then F.leaky_relu with the default slope 0.01
    y = jnp.sum(h * wo_ref[...], axis=-1, keepdims=True) + bo_ref[...]
    out_ref[...] = _leaky(y, 0.01).astype(out_ref.dtype)


def mlp_reg(x, params, *, batch_tile=None, compute_dtype=jnp.bfloat16):
    B, D_in = x.shape
    (w0, b0, g0, be0, m0, v0,
     w1, b1, g1, be1, m1, v1,
     wo, bo) = params
    H0 = w0.shape[1]
    H1 = w1.shape[1]

    # ---- fold BatchNorm1d (running stats, inference) into the linear layers
    s0 = g0 * jax.lax.rsqrt(v0 + BN_EPS)              # (1, H0)
    w0f = w0 * s0
    b0f = (b0 - m0) * s0 + be0
    s1 = g1 * jax.lax.rsqrt(v1 + BN_EPS)              # (1, H1)
    w1f = w1 * s1
    b1f = (b1 - m1) * s1 + be1
    wof = wo.reshape(1, H1)                           # head weight as a lane-dense row
    bof = jnp.asarray(bo, jnp.float32).reshape(1, 1)

    # ---- pad: input feature dim only to the bf16 sublane pack (no 8x x-traffic blowup),
    #      hidden dims to full 128-lane multiples (weights are tiny; exact zero-padding)
    Dp = _round_up(D_in, PACK)
    H0p = _round_up(H0, LANE)
    H1p = _round_up(H1, LANE)
    xp = _pad2(x, B, Dp).astype(compute_dtype)
    w0p = _pad2(w0f, Dp, H0p).astype(compute_dtype)
    b0p = _pad2(b0f, 1, H0p).astype(jnp.float32)
    w1p = _pad2(w1f, H0p, H1p).astype(compute_dtype)
    b1p = _pad2(b1f, 1, H1p).astype(jnp.float32)
    wop = _pad2(wof, 1, H1p).astype(jnp.float32)

    tb = _pick_batch_tile(B) if batch_tile is None else batch_tile
    if tb != B:
        assert tb % 8 == 0, "batch_tile must be a multiple of 8 (f32 sublane) or == B"

    full = lambda shape: pl.BlockSpec(shape, lambda i: (0, 0))

    return pl.pallas_call(
        mlp_reg_kernel,
        out_shape=jax.ShapeDtypeStruct((B, 1), jnp.float32),
        grid_spec=pltpu.PrefetchScalarGridSpec(
            num_scalar_prefetch=0,
            grid=(pl.cdiv(B, tb),),
            in_specs=[
                pl.BlockSpec((tb, Dp), lambda i: (i, 0)),    # x (batch-tiled)
                full((Dp, H0p)), full((1, H0p)),             # layer 0 folded W, b
                full((H0p, H1p)), full((1, H1p)),            # layer 1 folded W, b
                full((1, H1p)), full((1, 1)),                # head row weight, bias
            ],
            out_specs=pl.BlockSpec((tb, 1), lambda i: (i, 0)),
        ),
        compiler_params=pltpu.CompilerParams(
            dimension_semantics=("parallel",),
            vmem_limit_bytes=_vmem_limit_bytes(tb, Dp, H0p, H1p, compute_dtype),
        ),
    )(xp, w0p, b0p, w1p, b1p, wop, bof)


def init_params(key, input_dim, hidden_dim):
    """Deterministic synthetic parameters (Linear W^T, bias; BN gamma/beta/mean/var)."""
    keys = jax.random.split(key, 16)
    ki = iter(range(16))

    def lin(d_in, d_out):
        w = jax.random.normal(keys[next(ki)], (d_in, d_out), jnp.float32) * 0.1
        b = jax.random.normal(keys[next(ki)], (1, d_out), jnp.float32) * 0.1
        return w, b

    def bn(d):
        g = 1.0 + 0.1 * jax.random.normal(keys[next(ki)], (1, d), jnp.float32)
        be = 0.1 * jax.random.normal(keys[next(ki)], (1, d), jnp.float32)
        m = 0.1 * jax.random.normal(keys[next(ki)], (1, d), jnp.float32)
        v = jnp.abs(1.0 + 0.1 * jax.random.normal(keys[next(ki)], (1, d), jnp.float32))
        return g, be, m, v

    w0, b0 = lin(input_dim, hidden_dim[0])
    g0, be0, m0, v0 = bn(hidden_dim[0])
    w1, b1 = lin(hidden_dim[0], hidden_dim[1])
    g1, be1, m1, v1 = bn(hidden_dim[1])
    wo, bo = lin(hidden_dim[1], 1)
    return (w0, b0, g0, be0, m0, v0, w1, b1, g1, be1, m1, v1, wo, bo)


def reference_jax(x, params):
    """Faithful (unfolded) f32 reference for the PyTorch eval-mode forward."""
    (w0, b0, g0, be0, m0, v0,
     w1, b1, g1, be1, m1, v1,
     wo, bo) = params
    h = x @ w0 + b0
    h = (h - m0) / jnp.sqrt(v0 + BN_EPS) * g0 + be0
    h = jnp.where(h >= 0, h, 0.2 * h)
    h = h @ w1 + b1
    h = (h - m1) / jnp.sqrt(v1 + BN_EPS) * g1 + be1
    h = jnp.where(h >= 0, h, 0.2 * h)
    y = h @ wo + bo
    return jnp.where(y >= 0, y, 0.01 * y)


if __name__ == "__main__":
    key = jax.random.PRNGKey(0)
    kx, kp = jax.random.split(key)

    batch, input_dim = 64, 16
    hidden_dim = [32, 32]

    x = jax.random.normal(kx, (batch, input_dim), jnp.float32)
    params = init_params(kp, input_dim, hidden_dim)

    ref = reference_jax(x, params)

    out = jax.block_until_ready(mlp_reg(x, params))                               # bf16 matmuls
    out_f32 = jax.block_until_ready(mlp_reg(x, params, compute_dtype=jnp.float32))

    assert out.shape == (batch, 1) and out_f32.shape == (batch, 1)
    assert jnp.allclose(out_f32, ref, atol=5e-2, rtol=5e-2), "f32 kernel mismatch vs reference"
    assert jnp.allclose(out, ref, atol=5e-2, rtol=5e-2), "bf16 kernel mismatch vs reference"
    print("KERNEL_OK")
</pallas_src>

<mosaic_0001>
module attributes {stable_mosaic.version = 11 : i64} {
  func.func @mlp_reg_kernel(%arg0: i32, %arg1: memref<32x16xbf16, #tpu.memory_space<vmem>>, %arg2: memref<16x128xbf16, #tpu.memory_space<vmem>>, %arg3: memref<1x128xf32, #tpu.memory_space<vmem>>, %arg4: memref<128x128xbf16, #tpu.memory_space<vmem>>, %arg5: memref<1x128xf32, #tpu.memory_space<vmem>>, %arg6: memref<1x128xf32, #tpu.memory_space<vmem>>, %arg7: memref<1x1xf32, #tpu.memory_space<vmem>>, %arg8: memref<32x1xf32, #tpu.memory_space<vmem>>) attributes {dimension_semantics = [#tpu.dimension_semantics<parallel>], iteration_bounds = array<i64: 2>, scalar_prefetch = 0 : i64, scratch_operands = 0 : i64, tpu.core_type = #tpu.core_type<tc>, window_params = [{transform_indices = @transform_0, window_bounds = array<i64: 32, 16>}, {pipeline_mode = #tpu.pipeline_mode<synchronous>, transform_indices = @transform_1, window_bounds = array<i64: 16, 128>}, {pipeline_mode = #tpu.pipeline_mode<synchronous>, transform_indices = @transform_2, window_bounds = array<i64: 1, 128>}, {pipeline_mode = #tpu.pipeline_mode<synchronous>, transform_indices = @transform_3, window_bounds = array<i64: 128, 128>}, {pipeline_mode = #tpu.pipeline_mode<synchronous>, transform_indices = @transform_4, window_bounds = array<i64: 1, 128>}, {pipeline_mode = #tpu.pipeline_mode<synchronous>, transform_indices = @transform_5, window_bounds = array<i64: 1, 128>}, {pipeline_mode = #tpu.pipeline_mode<synchronous>, transform_indices = @transform_6, window_bounds = array<i64: 1, 1>}, {transform_indices = @transform_7, window_bounds = array<i64: 32, 1>}]} {
    %c0 = arith.constant 0 : index
    %c0_0 = arith.constant 0 : index
    %0 = vector.load %arg1[%c0, %c0_0] : memref<32x16xbf16, #tpu.memory_space<vmem>>, vector<32x16xbf16>
    %c0_1 = arith.constant 0 : index
    %c0_2 = arith.constant 0 : index
    %1 = vector.load %arg2[%c0_1, %c0_2] : memref<16x128xbf16, #tpu.memory_space<vmem>>, vector<16x128xbf16>
    %cst = arith.constant dense<0.000000e+00> : vector<32x128xf32>
    %2 = tpu.matmul %0, %1, %cst {dimension_numbers = #tpu.dot_dimension_numbers<[1], [0], [0], [1], [0, 0, 1, 1], [], []>} : vector<32x16xbf16>, vector<16x128xbf16>, vector<32x128xf32> -> vector<32x128xf32>
    %c0_3 = arith.constant 0 : index
    %c0_4 = arith.constant 0 : index
    %3 = vector.load %arg3[%c0_3, %c0_4] : memref<1x128xf32, #tpu.memory_space<vmem>>, vector<1x128xf32>
    %4 = vector.broadcast %3 : vector<1x128xf32> to vector<32x128xf32>
    %5 = arith.addf %2, %4 : vector<32x128xf32>
    %cst_5 = arith.constant 0.000000e+00 : f32
    %6 = vector.broadcast %cst_5 : f32 to vector<32x128xf32>
    %7 = arith.cmpf oge, %5, %6 : vector<32x128xf32>
    %cst_6 = arith.constant 2.000000e-01 : f32
    %8 = vector.broadcast %cst_6 : f32 to vector<32x128xf32>
    %9 = arith.mulf %8, %5 : vector<32x128xf32>
    %10 = arith.select %7, %5, %9 : vector<32x128xi1>, vector<32x128xf32>
    %11 = arith.truncf %10 : vector<32x128xf32> to vector<32x128xbf16>
    %c0_7 = arith.constant 0 : index
    %c0_8 = arith.constant 0 : index
    %12 = vector.load %arg4[%c0_7, %c0_8] : memref<128x128xbf16, #tpu.memory_space<vmem>>, vector<128x128xbf16>
    %cst_9 = arith.constant dense<0.000000e+00> : vector<32x128xf32>
    %13 = tpu.matmul %11, %12, %cst_9 {dimension_numbers = #tpu.dot_dimension_numbers<[1], [0], [0], [1], [0, 0, 1, 1], [], []>} : vector<32x128xbf16>, vector<128x128xbf16>, vector<32x128xf32> -> vector<32x128xf32>
    %c0_10 = arith.constant 0 : index
    %c0_11 = arith.constant 0 : index
    %14 = vector.load %arg5[%c0_10, %c0_11] : memref<1x128xf32, #tpu.memory_space<vmem>>, vector<1x128xf32>
    %15 = vector.broadcast %14 : vector<1x128xf32> to vector<32x128xf32>
    %16 = arith.addf %13, %15 : vector<32x128xf32>
    %cst_12 = arith.constant 0.000000e+00 : f32
    %17 = vector.broadcast %cst_12 : f32 to vector<32x128xf32>
    %18 = arith.cmpf oge, %16, %17 : vector<32x128xf32>
    %cst_13 = arith.constant 2.000000e-01 : f32
    %19 = vector.broadcast %cst_13 : f32 to vector<32x128xf32>
    %20 = arith.mulf %19, %16 : vector<32x128xf32>
    %21 = arith.select %18, %16, %20 : vector<32x128xi1>, vector<32x128xf32>
    %c0_14 = arith.constant 0 : index
    %c0_15 = arith.constant 0 : index
    %22 = vector.load %arg6[%c0_14, %c0_15] : memref<1x128xf32, #tpu.memory_space<vmem>>, vector<1x128xf32>
    %23 = vector.broadcast %22 : vector<1x128xf32> to vector<32x128xf32>
    %24 = arith.mulf %21, %23 : vector<32x128xf32>
    %cst_16 = arith.constant dense<0.000000e+00> : vector<32xf32>
    %25 = vector.multi_reduction <add>, %24, %cst_16 [1] : vector<32x128xf32> to vector<32xf32>
    %26 = vector.shape_cast %25 : vector<32xf32> to vector<32x1xf32>
    %c0_17 = arith.constant 0 : index
    %c0_18 = arith.constant 0 : index
    %27 = vector.load %arg7[%c0_17, %c0_18] : memref<1x1xf32, #tpu.memory_space<vmem>>, vector<1x1xf32>
    %28 = vector.broadcast %27 : vector<1x1xf32> to vector<32x1xf32>
    %29 = arith.addf %26, %28 : vector<32x1xf32>
    %cst_19 = arith.constant 0.000000e+00 : f32
    %30 = vector.broadcast %cst_19 : f32 to vector<32x1xf32>
    %31 = arith.cmpf oge, %29, %30 : vector<32x1xf32>
    %cst_20 = arith.constant 0.00999999977 : f32
    %32 = vector.broadcast %cst_20 : f32 to vector<32x1xf32>
    %33 = arith.mulf %32, %29 : vector<32x1xf32>
    %34 = arith.select %31, %29, %33 : vector<32x1xi1>, vector<32x1xf32>
    %c0_21 = arith.constant 0 : index
    %c0_22 = arith.constant 0 : index
    %35 = vector.load %arg8[%c0_21, %c0_22] : memref<32x1xf32, #tpu.memory_space<vmem>>, vector<32x1xf32>
    tpu.vector_store %arg8[%c0_21, %c0_22], %34 {strides = array<i32>} : memref<32x1xf32, #tpu.memory_space<vmem>>, vector<32x1xf32>,
    return
  }
  func.func @transform_0(%arg0: i32) -> (i32, i32) {
    %c0_i32 = arith.constant 0 : i32
    %c0_i32_0 = arith.constant 0 : i32
    return %arg0, %c0_i32 : i32, i32
  }
  func.func @transform_1(%arg0: i32) -> (i32, i32) {
    %c0_i32 = arith.constant 0 : i32
    %c0_i32_0 = arith.constant 0 : i32
    %c0_i32_1 = arith.constant 0 : i32
    return %c0_i32, %c0_i32_0 : i32, i32
  }
  func.func @transform_2(%arg0: i32) -> (i32, i32) {
    %c0_i32 = arith.constant 0 : i32
    %c0_i32_0 = arith.constant 0 : i32
    %c0_i32_1 = arith.constant 0 : i32
    return %c0_i32, %c0_i32_0 : i32, i32
  }
  func.func @transform_3(%arg0: i32) -> (i32, i32) {
    %c0_i32 = arith.constant 0 : i32
    %c0_i32_0 = arith.constant 0 : i32
    %c0_i32_1 = arith.constant 0 : i32
    return %c0_i32, %c0_i32_0 : i32, i32
  }
  func.func @transform_4(%arg0: i32) -> (i32, i32) {
    %c0_i32 = arith.constant 0 : i32
    %c0_i32_0 = arith.constant 0 : i32
    %c0_i32_1 = arith.constant 0 : i32
    return %c0_i32, %c0_i32_0 : i32, i32
  }
  func.func @transform_5(%arg0: i32) -> (i32, i32) {
    %c0_i32 = arith.constant 0 : i32
    %c0_i32_0 = arith.constant 0 : i32
    %c0_i32_1 = arith.constant 0 : i32
    return %c0_i32, %c0_i32_0 : i32, i32
  }
  func.func @transform_6(%arg0: i32) -> (i32, i32) {
    %c0_i32 = arith.constant 0 : i32
    %c0_i32_0 = arith.constant 0 : i32
    %c0_i32_1 = arith.constant 0 : i32
    return %c0_i32, %c0_i32_0 : i32, i32
  }
  func.func @transform_7(%arg0: i32) -> (i32, i32) {
    %c0_i32 = arith.constant 0 : i32
    %c0_i32_0 = arith.constant 0 : i32
    return %arg0, %c0_i32 : i32, i32
  }
}

</mosaic_0001>

<llo_original>
// kernel: tpu_custom_call.1
$region0: #{tpu_custom_call.1}
  #allocation0 [shape = 'u32[]', space=smem, size = 0x4, offset = 0x4, fixed_abs, tag = 'smem constant byte address 0x4 - core index']
  #allocation1 [shape = 'u32[144,128]{1,0:T(1,128)}', space=vmem, size = 0x12000, scoped, tag = 'internal scratch']
  #allocation2 [shape = 'f32[1,1]{1,0:T(1,128)S(1)}', space=vmem, size = 0x200, scoped, tag = 'scoped memory for tpu_custom_call.1']
  %s0 = inlined_call_operand.vmem [shape: bf16[64,16], index: 0, kind: input, shape index: {}]
  %s1 = inlined_call_operand.vmem [shape: bf16[16,128], index: 1, kind: input, shape index: {}]
  %s2 = inlined_call_operand.vmem [shape: f32[1,128], index: 2, kind: input, shape index: {}]
  %s3 = inlined_call_operand.hbm [shape: bf16[128,128], index: 3, kind: input, shape index: {}]
  %s4 = inlined_call_operand.vmem [shape: f32[1,128], index: 4, kind: input, shape index: {}]
  %s5 = inlined_call_operand.vmem [shape: f32[1,128], index: 5, kind: input, shape index: {}]
  %s6 = inlined_call_operand.<no memory space> [shape: f32[1,1], index: 6, kind: input, shape index: {}]
  %s7 = inlined_call_operand.vmem [shape: f32[64,1], index: 7, kind: output, shape index: {}]
  %s8 = sld [smem:[#allocation0]]
  $region65: #{tpu_custom_call.1} parent=0
    _
  %s10 = ssub.s32 1, %s8
  %s11 = scalar_select 0, %s10, %s8
  %v12 = vstv %s6
  %13 = vst [vmem:[#allocation2] sm:$0x1] %v12
  $region1: #{tpu_custom_call.1} parent=0
    #allocation3 [shape = 'u8[32768]{0}', space=vmem, size = 0x8000, scoped, tag = 'input window, operand 3, single buffered']
    #allocation4 [shape = 's32[2]{0}', space=sflag, size = 0x8, scoped, tag = 'scoped memory for tpu_custom_call.1']
    %14 = vsyncpa [#allocation4], 0
    loop: start=0, step=1, limit=4
    $region2: #{tpu_custom_call.1} parent=1 // loop_pre_header
      _
    $region3: #{tpu_custom_call.1} parent=1 // loop_header
      %s16 = sphi 0, %s20
      %p17 = scmp.ge.s32.totalorder %s16, 4
      %s26 = sphi 0, %s28
      %s29 = sphi 0, %s26
      %s30 = sphi 0, %s29
      %s46 = sphi 0, %s30
      %s50 = sphi 0, %s50
      %s52 = sphi 0, %s50
      %s53 = sphi 0, %s52
      %s67 = sphi 0, %s53
      %s71 = sphi 0, %s71
      %s73 = sphi 0, %s71
      %s74 = sphi 0, %s73
      %s88 = sphi 0, %s74
      %s92 = sphi 0, %s92
      %s94 = sphi 0, %s92
      %s95 = sphi 0, %s94
      %s109 = sphi 0, %s95
      %s113 = sphi 0, %s113
      %s115 = sphi 0, %s113
      %s116 = sphi 0, %s115
      %s130 = sphi 0, %s116
      %s134 = sphi 0, %s134
      %s136 = sphi 0, %s134
      %s137 = sphi 0, %s136
      %s151 = sphi 0, %s137
      %s155 = sphi 0, %s155
      %s157 = sphi 0, %s155
      %s158 = sphi 0, %s157
      %s172 = sphi 0, %s158
      %s178 = sphi 0, %s180
      %s181 = sphi 0, %s178
      %s182 = sphi 0, %s181
      %s198 = sphi 0, %s182
    $region4: #{tpu_custom_call.1} parent=1 // loop_header_branch
      %19 = sbr.rel (%p17) target = $region8
    $region5: #{tpu_custom_call.1} parent=1 // loop_body
      %s21 = ssub.s32 %s16, 1
      %s22 = ssub.s32 %s16, 2
      %s23 = sadd.s32 %s16, 1
      %s24 = ssub.s32 %s16, %s23
      %p25 = scmp.eq.s32.totalorder %s24, 0
      %s27 = sadd.s32 %s26, 1
      %s28 = scalar_select %p25, %s26, %s27
      %p31 = pneg %p25
      %p32 = scmp.eq.s32.totalorder %s16, 1
      %p33 = por %p31, %p32
      %p34 = scmp.ne.s32.totalorder %s26, %s29
      %p35 = scmp.eq.s32.totalorder %s16, 0
      %p36 = por %p34, %p35
      %p37 = scmp.ne.s32.totalorder %s26, %s29
      %p38 = scmp.eq.s32.totalorder %s21, 1
      %p39 = por %p37, %p38
      %p40 = scmp.ne.s32.totalorder %s29, %s30
      %p41 = scmp.eq.s32.totalorder %s21, 0
      %p42 = por %p40, %p41
      %p43 = scmp.ne.s32.totalorder %s29, %s30
      %p44 = scmp.eq.s32.totalorder %s22, 1
      %p45 = por %p43, %p44
      %p47 = scmp.ne.s32.totalorder %s30, %s46
      %p48 = scmp.eq.s32.totalorder %s22, 0
      %p49 = por %p47, %p48
      %s51 = sadd.s32 %s50, 1
      %p54 = scmp.eq.s32.totalorder %s16, 1
      %p55 = scmp.ne.s32.totalorder %s50, %s52
      %p56 = scmp.eq.s32.totalorder %s16, 0
      %p57 = por %p55, %p56
      %p58 = scmp.ne.s32.totalorder %s50, %s52
      %p59 = scmp.eq.s32.totalorder %s21, 1
      %p60 = por %p58, %p59
      %p61 = scmp.ne.s32.totalorder %s52, %s53
      %p62 = scmp.eq.s32.totalorder %s21, 0
      %p63 = por %p61, %p62
      %p64 = scmp.ne.s32.totalorder %s52, %s53
      %p65 = scmp.eq.s32.totalorder %s22, 1
      %p66 = por %p64, %p65
      %p68 = scmp.ne.s32.totalorder %s53, %s67
      %p69 = scmp.eq.s32.totalorder %s22, 0
      %p70 = por %p68, %p69
      %s72 = sadd.s32 %s71, 1
      %p75 = scmp.eq.s32.totalorder %s16, 1
      %p76 = scmp.ne.s32.totalorder %s71, %s73
      %p77 = scmp.eq.s32.totalorder %s16, 0
      %p78 = por %p76, %p77
      %p79 = scmp.ne.s32.totalorder %s71, %s73
      %p80 = scmp.eq.s32.totalorder %s21, 1
      %p81 = por %p79, %p80
      %p82 = scmp.ne.s32.totalorder %s73, %s74
      %p83 = scmp.eq.s32.totalorder %s21, 0
      %p84 = por %p82, %p83
      %p85 = scmp.ne.s32.totalorder %s73, %s74
      %p86 = scmp.eq.s32.totalorder %s22, 1
      %p87 = por %p85, %p86
      %p89 = scmp.ne.s32.totalorder %s74, %s88
      %p90 = scmp.eq.s32.totalorder %s22, 0
      %p91 = por %p89, %p90
      %s93 = sadd.s32 %s92, 1
      %p96 = scmp.eq.s32.totalorder %s16, 1
      %p97 = scmp.ne.s32.totalorder %s92, %s94
      %p98 = scmp.eq.s32.totalorder %s16, 0
      %p99 = por %p97, %p98
      %p100 = scmp.ne.s32.totalorder %s92, %s94
      %p101 = scmp.eq.s32.totalorder %s21, 1
      %p102 = por %p100, %p101
      %p103 = scmp.ne.s32.totalorder %s94, %s95
      %p104 = scmp.eq.s32.totalorder %s21, 0
      %p105 = por %p103, %p104
      %p106 = scmp.ne.s32.totalorder %s94, %s95
      %p107 = scmp.eq.s32.totalorder %s22, 1
      %p108 = por %p106, %p107
      %p110 = scmp.ne.s32.totalorder %s95, %s109
      %p111 = scmp.eq.s32.totalorder %s22, 0
      %p112 = por %p110, %p111
      %s114 = sadd.s32 %s113, 1
      %p117 = scmp.eq.s32.totalorder %s16, 1
      %p118 = scmp.ne.s32.totalorder %s113, %s115
      %p119 = scmp.eq.s32.totalorder %s16, 0
      %p120 = por %p118, %p119
      %p121 = scmp.ne.s32.totalorder %s113, %s115
      %p122 = scmp.eq.s32.totalorder %s21, 1
      %p123 = por %p121, %p122
      %p124 = scmp.ne.s32.totalorder %s115, %s116
      %p125 = scmp.eq.s32.totalorder %s21, 0
      %p126 = por %p124, %p125
      %p127 = scmp.ne.s32.totalorder %s115, %s116
      %p128 = scmp.eq.s32.totalorder %s22, 1
      %p129 = por %p127, %p128
      %p131 = scmp.ne.s32.totalorder %s116, %s130
      %p132 = scmp.eq.s32.totalorder %s22, 0
      %p133 = por %p131, %p132
      %s135 = sadd.s32 %s134, 1
      %p138 = scmp.eq.s32.totalorder %s16, 1
      %p139 = scmp.ne.s32.totalorder %s134, %s136
      %p140 = scmp.eq.s32.totalorder %s16, 0
      %p141 = por %p139, %p140
      %p142 = scmp.ne.s32.totalorder %s134, %s136
      %p143 = scmp.eq.s32.totalorder %s21, 1
      %p144 = por %p142, %p143
      %p145 = scmp.ne.s32.totalorder %s136, %s137
      %p146 = scmp.eq.s32.totalorder %s21, 0
      %p147 = por %p145, %p146
      %p148 = scmp.ne.s32.totalorder %s136, %s137
      %p149 = scmp.eq.s32.totalorder %s22, 1
      %p150 = por %p148, %p149
      %p152 = scmp.ne.s32.totalorder %s137, %s151
      %p153 = scmp.eq.s32.totalorder %s22, 0
      %p154 = por %p152, %p153
      %s156 = sadd.s32 %s155, 1
      %p159 = scmp.eq.s32.totalorder %s16, 1
      %p160 = scmp.ne.s32.totalorder %s155, %s157
      %p161 = scmp.eq.s32.totalorder %s16, 0
      %p162 = por %p160, %p161
      %p163 = scmp.ne.s32.totalorder %s155, %s157
      %p164 = scmp.eq.s32.totalorder %s21, 1
      %p165 = por %p163, %p164
      %p166 = scmp.ne.s32.totalorder %s157, %s158
      %p167 = scmp.eq.s32.totalorder %s21, 0
      %p168 = por %p166, %p167
      %p169 = scmp.ne.s32.totalorder %s157, %s158
      %p170 = scmp.eq.s32.totalorder %s22, 1
      %p171 = por %p169, %p170
      %p173 = scmp.ne.s32.totalorder %s158, %s172
      %p174 = scmp.eq.s32.totalorder %s22, 0
      %p175 = por %p173, %p174
      %s176 = ssub.s32 %s16, %s23
      %p177 = scmp.eq.s32.totalorder %s176, 0
      %s179 = sadd.s32 %s178, 1
      %s180 = scalar_select %p177, %s178, %s179
      %p183 = pneg %p177
      %p184 = scmp.eq.s32.totalorder %s16, 1
      %p185 = por %p183, %p184
      %p186 = scmp.ne.s32.totalorder %s178, %s181
      %p187 = scmp.eq.s32.totalorder %s16, 0
      %p188 = por %p186, %p187
      %p189 = scmp.ne.s32.totalorder %s178, %s181
      %p190 = scmp.eq.s32.totalorder %s21, 1
      %p191 = por %p189, %p190
      %p192 = scmp.ne.s32.totalorder %s181, %s182
      %p193 = scmp.eq.s32.totalorder %s21, 0
      %p194 = por %p192, %p193
      %p195 = scmp.ne.s32.totalorder %s181, %s182
      %p196 = scmp.eq.s32.totalorder %s22, 1
      %p197 = por %p195, %p196
      %p199 = scmp.ne.s32.totalorder %s182, %s198
      %p200 = scmp.eq.s32.totalorder %s22, 0
      %p201 = por %p199, %p200
      %p202 = scmp.le.s32.totalorder 1, %s16
      %p203 = scmp.lt.s32.totalorder %s16, 3
      %p204 = pnand %p202, %p203
      %p205 = pneg %p204
      // Predicated region
      $region9: #{tpu_custom_call.1} parent=5 // pred_check
        _
      $region10: #{tpu_custom_call.1} parent=5 // pred_check_branch
        %207 = sbr.rel (%p204) target = $region12
      $region11: #{tpu_custom_call.1} parent=5 // pred_region
        %s208 = ssub.s32 %s16, 1
        // Predicated region
        $region13: #{tpu_custom_call.1} parent=11 // pred_check
          %p209 = pneg %p63
        $region14: #{tpu_custom_call.1} parent=11 // pred_check_branch
          %211 = sbr.rel (%p209) target = $region16
        $region15: #{tpu_custom_call.1} parent=11 // pred_region
          _
        $region16: #{tpu_custom_call.1} parent=11 // pred_fallthru
          _
        // Predicated region
        $region17: #{tpu_custom_call.1} parent=11 // pred_check
          %p212 = pneg %p84
        $region18: #{tpu_custom_call.1} parent=11 // pred_check_branch
          %214 = sbr.rel (%p212) target = $region20
        $region19: #{tpu_custom_call.1} parent=11 // pred_region
          _
        $region20: #{tpu_custom_call.1} parent=11 // pred_fallthru
          _
        // Predicated region
        $region21: #{tpu_custom_call.1} parent=11 // pred_check
          %p215 = pneg %p105
        $region22: #{tpu_custom_call.1} parent=11 // pred_check_branch
          %217 = sbr.rel (%p215) target = $region24
        $region23: #{tpu_custom_call.1} parent=11 // pred_region
          %s219 = ssub.s32 1024, 1024
          %220 = vsyncadd [#allocation4], %s219
          %s221 = sshll.u32 [#allocation3], 4
          %s222 = int_to_ptr.vmem [resolvable:$true] %s221
          %227 = dma.hbm_to_vmem [thread:$0]  %s3, 1024, %s222, [#allocation4], 64, 64, 4
        $region24: #{tpu_custom_call.1} parent=11 // pred_fallthru
          _
        // Predicated region
        $region25: #{tpu_custom_call.1} parent=11 // pred_check
          %p228 = pneg %p126
        $region26: #{tpu_custom_call.1} parent=11 // pred_check_branch
          %230 = sbr.rel (%p228) target = $region28
        $region27: #{tpu_custom_call.1} parent=11 // pred_region
          _
        $region28: #{tpu_custom_call.1} parent=11 // pred_fallthru
          _
        // Predicated region
        $region29: #{tpu_custom_call.1} parent=11 // pred_check
          %p231 = pneg %p147
        $region30: #{tpu_custom_call.1} parent=11 // pred_check_branch
          %233 = sbr.rel (%p231) target = $region32
        $region31: #{tpu_custom_call.1} parent=11 // pred_region
          _
        $region32: #{tpu_custom_call.1} parent=11 // pred_fallthru
          _
        // Predicated region
        $region33: #{tpu_custom_call.1} parent=11 // pred_check
          %p234 = pneg %p168
        $region34: #{tpu_custom_call.1} parent=11 // pred_check_branch
          %236 = sbr.rel (%p234) target = $region36
        $region35: #{tpu_custom_call.1} parent=11 // pred_region
          _
        $region36: #{tpu_custom_call.1} parent=11 // pred_fallthru
          _
      $region12: #{tpu_custom_call.1} parent=5 // pred_fallthru
        _
      %p237 = scmp.lt.s32.totalorder %s16, 2
      // Predicated region
      $region37: #{tpu_custom_call.1} parent=5 // pred_check
        %p238 = pneg %p237
      $region38: #{tpu_custom_call.1} parent=5 // pred_check_branch
        %240 = sbr.rel (%p238) target = $region40
      $region39: #{tpu_custom_call.1} parent=5 // pred_region
        // Predicated region
        $region41: #{tpu_custom_call.1} parent=39 // pred_check
          %p241 = pneg %p36
        $region42: #{tpu_custom_call.1} parent=39 // pred_check_branch
          %243 = sbr.rel (%p241) target = $region44
        $region43: #{tpu_custom_call.1} parent=39 // pred_region
          %s244 = smul.u32 4, %s16
          %p245 = scmp.lt.s32.totalorder %s244, 7
          %s246 = scalar_select %p245, %s244, 7
          %s247 = smul.addr %s246, 4
          %s248 = scalar_lea.vmem %s0, %s247
          %s249 = smul.u32 4, %s16
        $region44: #{tpu_custom_call.1} parent=39 // pred_fallthru
          _
      $region40: #{tpu_custom_call.1} parent=5 // pred_fallthru
        _
      %p250 = scmp.le.s32.totalorder 1, %s16
      %p251 = scmp.lt.s32.totalorder %s16, 3
      %p252 = pnand %p250, %p251
      %p253 = pneg %p252
      // Predicated region
      $region45: #{tpu_custom_call.1} parent=5 // pred_check
        _
      $region46: #{tpu_custom_call.1} parent=5 // pred_check_branch
        %255 = sbr.rel (%p252) target = $region48
      $region47: #{tpu_custom_call.1} parent=5 // pred_region
        %s256 = ssub.s32 %s16, 1
        // Predicated region
        $region49: #{tpu_custom_call.1} parent=47 // pred_check
          %p257 = pneg %p105
        $region50: #{tpu_custom_call.1} parent=47 // pred_check_branch
          %259 = sbr.rel (%p257) target = $region52
        $region51: #{tpu_custom_call.1} parent=47 // pred_region
          %260 = dma.done [#allocation4], 1024
        $region52: #{tpu_custom_call.1} parent=47 // pred_fallthru
          _
        %s261 = smul.u32 4, %s21
        %p262 = scmp.lt.s32.totalorder %s261, 7
        %s263 = scalar_select %p262, %s261, 7
        %s264 = smul.addr %s263, 4
        %s265 = scalar_lea.vmem %s0, %s264
        %p266 = pneg %p42
        %p267 = pneg %p39
        %p268 = pneg %p63
        %p269 = pneg %p60
        %p270 = pneg %p84
        %p271 = pneg %p81
        %p272 = pneg %p105
        %p273 = pneg %p102
        %p274 = pneg %p126
        %p275 = pneg %p123
        %p276 = pneg %p147
        %p277 = pneg %p144
        %p278 = pneg %p168
        %p279 = pneg %p165
        %p280 = pneg %p194
        %p281 = pneg %p191
        %s282 = smul.u32 4, %s21
        %p283 = scmp.lt.s32.totalorder %s282, 7
        %s284 = scalar_select %p283, %s282, 7
        %s285 = smul.addr %s284, 8
        %s286 = scalar_lea.vmem %s7, %s285
        %s287 = smul.u32 4, %s21
        %p288 = scmp.lt.s32.totalorder %s287, 7
        %s289 = scalar_select %p288, %s287, 7
        %s290 = smul.addr %s289, 4
        %s291 = scalar_lea.vmem %s0, %s290
        %s292 = smul.u32 4, %s21
        %s293 = smul.u32 4, %s21
        %p294 = scmp.lt.s32.totalorder %s293, 7
        %s295 = scalar_select %p294, %s293, 7
        %s296 = smul.addr %s295, 8
        %s297 = scalar_lea.vmem %s7, %s296
        %s298 = smul.u32 4, %s21
        %v300 = vld [vmem:[%s291] sm:$0xf]
        %v301 = vld [vmem:[%s291 + $0x4] sm:$0xf]
        %v302 = vld [vmem:[%s291 + $0x8] sm:$0xf]
        %v303 = vld [vmem:[%s291 + $0xc] sm:$0xf]
        %v304 = vld [vmem:[%s1] sm:$0xf]
        %v305 = vld [vmem:[%s1 + $0x4] sm:$0xf]
        %v306 = vld [vmem:[%s2] sm:$0x1]
        %v308 = vlaneseq
        %v309 = vshrl.u32 %v308, 7
        %v310 = vsub.s32 0, %v309
        %v311 = vrot.slane %v306, %v310
        %v317 = vunpack.c.l.b16 %v300
        %v318 = vunpack.c.l.b16 %v301
        %v319 = vunpack.c.l.b16 %v302
        %v320 = vunpack.c.l.b16 %v303
        %v321 = vpack.c.b16 %v318, %v317
        %v322 = vpack.c.b16 %v320, %v319
        %v325 = vunpack.c.l.b16 %v304
        %v326 = vunpack.c.l.b16 %v305
        %v327 = vpack.c.b16 %v326, %v325
        %vm329 = vcmask 130048
        %v331 = vsel %vm329, %v321, 0
        %v334 = vsel %vm329, %v322, 0
        %336 = vmatprep.subr.bf16.mxu0 0
        %337 = vmatpush1.bf16.msra.mxu0 0
        %338 = vmatprep.subr.bf16.mxu0 0
        %339 = vmatpush1.bf16.msra.mxu0 0
        %340 = vmatprep.subr.bf16.mxu0 0
        %341 = vmatpush1.bf16.msra.mxu0 0
        %342 = vmatprep.subr.bf16.mxu0 0
        %343 = vmatpush1.bf16.msra.mxu0 0
        %344 = vmatprep.subr.bf16.mxu0 0
        %345 = vmatpush1.bf16.msra.mxu0 0
        %346 = vmatprep.subr.bf16.mxu0 0
        %347 = vmatpush1.bf16.msra.mxu0 0
        %348 = vmatprep.subr.bf16.mxu0 0
        %349 = vmatpush1.bf16.msra.mxu0 0
        %350 = vmatprep.subr.bf16.mxu0 0
        %351 = vmatpush1.bf16.msra.mxu0 %v327
        %352 = vmatprep.subr.bf16.mxu0 0
        %353 = vmatpush2.bf16.msra.mxu0 0
        %354 = vmatprep.subr.bf16.mxu0 0
        %355 = vmatpush2.bf16.msra.mxu0 0
        %356 = vmatprep.subr.bf16.mxu0 0
        %357 = vmatpush2.bf16.msra.mxu0 0
        %358 = vmatprep.subr.bf16.mxu0 0
        %359 = vmatpush2.bf16.msra.mxu0 0
        %360 = vmatprep.subr.bf16.mxu0 0
        %361 = vmatpush2.bf16.msra.mxu0 0
        %362 = vmatprep.subr.bf16.mxu0 0
        %363 = vmatpush2.bf16.msra.mxu0 0
        %364 = vmatprep.subr.bf16.mxu0 0
        %365 = vmatpush2.bf16.msra.mxu0 0
        %366 = vmatprep.subr.bf16.mxu0 0
        %367 = vmatpush2.bf16.msra.mxu0 0
        %368 = vmatprep.mubr.bf16.mxu0 0
        %369 = vmatmul.mubr.bf16.gmra.mxu0 %v331
        %v370 = vpop.f32.mrf.mxu0
        %v371 = vadd.f32 %v311, %v370
        %v372 = vpop.f32.mrf.mxu0
        %v373 = vpop.f32.mrf.mxu0
        %v374 = vadd.f32 %v311, %v373
        %v375 = vpop.f32.mrf.mxu0
        %376 = vmatprep.mubr.bf16.mxu0 0
        %377 = vmatmul.mubr.bf16.gmra.mxu0 %v334
        %v378 = vpop.f32.mrf.mxu0
        %v379 = vadd.f32 %v311, %v378
        %v380 = vpop.f32.mrf.mxu0
        %v381 = vpop.f32.mrf.mxu0
        %v382 = vadd.f32 %v311, %v381
        %v383 = vpop.f32.mrf.mxu0
        %384 = vdwg.mxu0
        %vm385 = vcmp.ge.f32.partialorder %v371, 0.0
        %vm386 = vcmp.ge.f32.partialorder %v374, 0.0
        %vm387 = vcmp.ge.f32.partialorder %v379, 0.0
        %vm388 = vcmp.ge.f32.partialorder %v382, 0.0
        %v389 = vmul.f32 %v371, 0.2
        %v390 = vmul.f32 %v374, 0.2
        %v391 = vmul.f32 %v379, 0.2
        %v392 = vmul.f32 %v382, 0.2
        %v393 = vsel %vm385, %v371, %v389
        %v394 = vsel %vm386, %v374, %v390
        %v395 = vsel %vm387, %v379, %v391
        %v396 = vsel %vm388, %v382, %v392
        %v397 = vpack.c.bf16 %v394, %v393
        %v398 = vpack.c.bf16 %v396, %v395
        %v399 = vld [vmem:[#allocation3] sm:$0xf]
        %v400 = vld [vmem:[#allocation3 + $0x4] sm:$0xf]
        %v401 = vld [vmem:[#allocation3 + $0x8] sm:$0xf]
        %v402 = vld [vmem:[#allocation3 + $0xc] sm:$0xf]
        %v403 = vld [vmem:[#allocation3 + $0x10] sm:$0xf]
        %v404 = vld [vmem:[#allocation3 + $0x14] sm:$0xf]
        %v405 = vld [vmem:[#allocation3 + $0x18] sm:$0xf]
        %v406 = vld [vmem:[#allocation3 + $0x1c] sm:$0xf]
        %v407 = vld [vmem:[#allocation3 + $0x20] sm:$0xf]
        %v408 = vld [vmem:[#allocation3 + $0x24] sm:$0xf]
        %v409 = vld [vmem:[#allocation3 + $0x28] sm:$0xf]
        %v410 = vld [vmem:[#allocation3 + $0x2c] sm:$0xf]
        %v411 = vld [vmem:[#allocation3 + $0x30] sm:$0xf]
        %v412 = vld [vmem:[#allocation3 + $0x34] sm:$0xf]
        %v413 = vld [vmem:[#allocation3 + $0x38] sm:$0xf]
        %v414 = vld [vmem:[#allocation3 + $0x3c] sm:$0xf]
        %v415 = vld [vmem:[%s4] sm:$0x1]
        %v417 = vlaneseq
        %v418 = vshrl.u32 %v417, 7
        %v419 = vsub.s32 0, %v418
        %v420 = vrot.slane %v415, %v419
        %v438 = vunpack.c.l.b16 %v399
        %v439 = vunpack.c.l.b16 %v400
        %v440 = vunpack.c.l.b16 %v401
        %v441 = vunpack.c.l.b16 %v402
        %v442 = vunpack.c.l.b16 %v403
        %v443 = vunpack.c.l.b16 %v404
        %v444 = vunpack.c.l.b16 %v405
        %v445 = vunpack.c.l.b16 %v406
        %v446 = vunpack.c.l.b16 %v407
        %v447 = vunpack.c.l.b16 %v408
        %v448 = vunpack.c.l.b16 %v409
        %v449 = vunpack.c.l.b16 %v410
        %v450 = vunpack.c.l.b16 %v411
        %v451 = vunpack.c.l.b16 %v412
        %v452 = vunpack.c.l.b16 %v413
        %v453 = vunpack.c.l.b16 %v414
        %v454 = vpack.c.b16 %v439, %v438
        %v455 = vpack.c.b16 %v441, %v440
        %v456 = vpack.c.b16 %v443, %v442
        %v457 = vpack.c.b16 %v445, %v444
        %v458 = vpack.c.b16 %v447, %v446
        %v459 = vpack.c.b16 %v449, %v448
        %v460 = vpack.c.b16 %v451, %v450
        %v461 = vpack.c.b16 %v453, %v452
        %470 = vmatprep.subr.bf16.mxu0 0
        %471 = vmatpush1.bf16.msra.mxu0 %v461
        %472 = vmatprep.subr.bf16.mxu0 0
        %473 = vmatpush1.bf16.msra.mxu0 %v460
        %474 = vmatprep.subr.bf16.mxu0 0
        %475 = vmatpush1.bf16.msra.mxu0 %v459
        %476 = vmatprep.subr.bf16.mxu0 0
        %477 = vmatpush1.bf16.msra.mxu0 %v458
        %478 = vmatprep.subr.bf16.mxu0 0
        %479 = vmatpush1.bf16.msra.mxu0 %v457
        %480 = vmatprep.subr.bf16.mxu0 0
        %481 = vmatpush1.bf16.msra.mxu0 %v456
        %482 = vmatprep.subr.bf16.mxu0 0
        %483 = vmatpush1.bf16.msra.mxu0 %v455
        %484 = vmatprep.subr.bf16.mxu0 0
        %485 = vmatpush1.bf16.msra.mxu0 %v454
        %486 = vmatprep.subr.bf16.mxu0 0
        %487 = vmatpush2.bf16.msra.mxu0 0
        %488 = vmatprep.subr.bf16.mxu0 0
        %489 = vmatpush2.bf16.msra.mxu0 0
        %490 = vmatprep.subr.bf16.mxu0 0
        %491 = vmatpush2.bf16.msra.mxu0 0
        %492 = vmatprep.subr.bf16.mxu0 0
        %493 = vmatpush2.bf16.msra.mxu0 0
        %494 = vmatprep.subr.bf16.mxu0 0
        %495 = vmatpush2.bf16.msra.mxu0 0
        %496 = vmatprep.subr.bf16.mxu0 0
        %497 = vmatpush2.bf16.msra.mxu0 0
        %498 = vmatprep.subr.bf16.mxu0 0
        %499 = vmatpush2.bf16.msra.mxu0 0
        %500 = vmatprep.subr.bf16.mxu0 0
        %501 = vmatpush2.bf16.msra.mxu0 0
        %502 = vmatprep.mubr.bf16.mxu0 0
        %503 = vmatmul.mubr.bf16.gmra.mxu0 %v397
        %v504 = vpop.f32.mrf.mxu0
        %v505 = vadd.f32 %v420, %v504
        %v506 = vpop.f32.mrf.mxu0
        %v507 = vpop.f32.mrf.mxu0
        %v508 = vadd.f32 %v420, %v507
        %v509 = vpop.f32.mrf.mxu0
        %510 = vmatprep.mubr.bf16.mxu0 0
        %511 = vmatmul.mubr.bf16.gmra.mxu0 %v398
        %v512 = vpop.f32.mrf.mxu0
        %v513 = vadd.f32 %v420, %v512
        %v514 = vpop.f32.mrf.mxu0
        %v515 = vpop.f32.mrf.mxu0
        %v516 = vadd.f32 %v420, %v515
        %v517 = vpop.f32.mrf.mxu0
        %518 = vdwg.mxu0
        %vm519 = vcmp.ge.f32.partialorder %v505, 0.0
        %vm520 = vcmp.ge.f32.partialorder %v508, 0.0
        %vm521 = vcmp.ge.f32.partialorder %v513, 0.0
        %vm522 = vcmp.ge.f32.partialorder %v516, 0.0
        %v523 = vmul.f32 %v505, 0.2
        %v524 = vmul.f32 %v508, 0.2
        %v525 = vmul.f32 %v513, 0.2
        %v526 = vmul.f32 %v516, 0.2
        %v527 = vsel %vm519, %v505, %v523
        %v528 = vsel %vm520, %v508, %v524
        %v529 = vsel %vm521, %v513, %v525
        %v530 = vsel %vm522, %v516, %v526
        %v531 = vld [vmem:[%s5] sm:$0x1]
        %v533 = vlaneseq
        %v534 = vshrl.u32 %v533, 7
        %v535 = vsub.s32 0, %v534
        %v536 = vrot.slane %v531, %v535
        %v538 = vmul.f32 %v527, %v536
        %v539 = vmul.f32 %v528, %v536
        %v540 = vmul.f32 %v529, %v536
        %v541 = vmul.f32 %v530, %v536
        %542 = vadd.xlane.f32.xlu0 %v538
        %v543 = vpop.xlane.xlu0 %542
        %544 = vadd.xlane.f32.xlu0 %v539
        %v545 = vpop.xlane.xlu0 %544
        %546 = vadd.xlane.f32.xlu0 %v540
        %v547 = vpop.xlane.xlu0 %546
        %548 = vadd.xlane.f32.xlu0 %v541
        %v549 = vpop.xlane.xlu0 %548
        %v550 = vld [vmem:[#allocation2] sm:$0x1]
        %v552 = vlaneseq
        %v553 = vshrl.u32 %v552, 7
        %v554 = vsub.s32 0, %v553
        %v555 = vrot.slane %v550, %v554
        %v557 = vadd.f32 %v543, %v555
        %v558 = vadd.f32 %v545, %v555
        %v559 = vadd.f32 %v547, %v555
        %v560 = vadd.f32 %v549, %v555
        %vm561 = vcmp.ge.f32.partialorder %v557, 0.0
        %vm562 = vcmp.ge.f32.partialorder %v558, 0.0
        %vm563 = vcmp.ge.f32.partialorder %v559, 0.0
        %vm564 = vcmp.ge.f32.partialorder %v560, 0.0
        %v565 = vmul.f32 %v557, 0.01
        %v566 = vmul.f32 %v558, 0.01
        %v567 = vmul.f32 %v559, 0.01
        %v568 = vmul.f32 %v560, 0.01
        %v569 = vsel %vm561, %v557, %v565
        %v570 = vsel %vm562, %v558, %v566
        %v571 = vsel %vm563, %v559, %v567
        %v572 = vsel %vm564, %v560, %v568
        %vm573 = vcmask 7168
        %574 = vst.msk [vmem:[%s297] sm:$0xff] %vm573, %v569
        %575 = vst.msk [vmem:[%s297 + $0x8] sm:$0xff] %vm573, %v570
        %576 = vst.msk [vmem:[%s297 + $0x10] sm:$0xff] %vm573, %v571
        %577 = vst.msk [vmem:[%s297 + $0x18] sm:$0xff] %vm573, %v572
        %s578 = smul.u32 4, %s21
        %p579 = scmp.lt.s32.totalorder %s578, 7
        %s580 = scalar_select %p579, %s578, 7
        %s581 = smul.addr %s580, 8
        %s582 = scalar_lea.vmem %s7, %s581
        // Predicated region
        $region53: #{tpu_custom_call.1} parent=47 // pred_check
          %p583 = pneg %p191
        $region54: #{tpu_custom_call.1} parent=47 // pred_check_branch
          %585 = sbr.rel (%p583) target = $region56
        $region55: #{tpu_custom_call.1} parent=47 // pred_region
          %s586 = smul.u32 4, %s21
        $region56: #{tpu_custom_call.1} parent=47 // pred_fallthru
          _
      $region48: #{tpu_custom_call.1} parent=5 // pred_fallthru
        _
      %p587 = scmp.le.s32.totalorder 2, %s16
      // Predicated region
      $region57: #{tpu_custom_call.1} parent=5 // pred_check
        %p588 = pneg %p587
      $region58: #{tpu_custom_call.1} parent=5 // pred_check_branch
        %590 = sbr.rel (%p588) target = $region60
      $region59: #{tpu_custom_call.1} parent=5 // pred_region
        %s591 = ssub.s32 %s16, 2
        // Predicated region
        $region61: #{tpu_custom_call.1} parent=59 // pred_check
          %p592 = pneg %p197
        $region62: #{tpu_custom_call.1} parent=59 // pred_check_branch
          %594 = sbr.rel (%p592) target = $region64
        $region63: #{tpu_custom_call.1} parent=59 // pred_region
          %s595 = smul.u32 4, %s22
          %p596 = scmp.lt.s32.totalorder %s595, 7
          %s597 = scalar_select %p596, %s595, 7
          %s598 = smul.addr %s597, 8
          %s599 = scalar_lea.vmem %s7, %s598
        $region64: #{tpu_custom_call.1} parent=59 // pred_fallthru
          _
      $region60: #{tpu_custom_call.1} parent=5 // pred_fallthru
        _
    $region6: #{tpu_custom_call.1} parent=1 // loop_footer
      %s20 = sadd.s32 1, %s16
    $region7: #{tpu_custom_call.1} parent=1 // loop_footer_branch
      %15 = sbr.rel target = $region3
    $region8: #{tpu_custom_call.1} parent=1 // loop_exit
      _
    %600 = vsyncpa [#allocation4], 1
    %s601 = scalar_lea.sflag [#allocation4], 1
    %602 = vsyncpa %s601, 1

</llo_original>
